<compile_context>
chip_gen: v5e
topology: v5e:2x2
jax: 0.10.0
libtpu: 0.0.40
codegen_flags: <defaults>
</compile_context>

<pallas_src>
import jax
import jax.numpy as jnp
from jax.experimental import pallas as pl
from jax.experimental.pallas import tpu as pltpu

VOCAB_SIZE = 100
HIDDEN = 32
SEQ_LEN = 8

_HP = jax.lax.Precision.HIGHEST


# ----------------------------------------------------------------------------
# Kernel: whole recurrence in one grid step
# ----------------------------------------------------------------------------
def gru_seq_kernel(tok_ref,     # SMEM (T,) int32   scalar-prefetched token ids
                   emb_ref,     # VMEM (V, H)       embedding table (resident)
                   w_ih_ref,    # VMEM (H, 3H)      W_ih^T, gate cols [r | z | n]
                   w_hh_ref,    # VMEM (H, 3H)      W_hh^T, gate cols [r | z | n]
                   b_i_ref,     # VMEM (1, 3H)      b_ih
                   b_h_ref,     # VMEM (1, 3H)      b_hh
                   h0_ref,      # VMEM (1, H)       initial hidden
                   out_ref):    # VMEM (1, T*H)     all hidden states, lane-dense
    T = tok_ref.shape[0]
    H = h0_ref.shape[1]

    # 1) Gather the T embedding rows from the resident table (scalar-indexed
    #    dynamic sublane slices; no HBM traffic).
    x_all = jnp.concatenate(
        [emb_ref[pl.ds(tok_ref[t], 1), :] for t in range(T)], axis=0)      # (T, H)

    # 2) Batched input projection for all timesteps in one MXU pass
    #    (the only place this workload can use >1 MXU row).
    gi = jnp.dot(x_all, w_ih_ref[...], precision=_HP,
                 preferred_element_type=jnp.float32) + b_i_ref[...]        # (T, 3H)

    w_hh = w_hh_ref[...]
    b_h = b_h_ref[...]
    h = h0_ref[...]                                                        # (1, H)

    # 3) Fully unrolled recurrence; hidden state lives in vregs.
    outs = []
    for t in range(T):
        gh = jnp.dot(h, w_hh, precision=_HP,
                     preferred_element_type=jnp.float32) + b_h             # (1, 3H)
        g_t = gi[t:t + 1, :]                                               # (1, 3H)
        rz = jax.nn.sigmoid(g_t[:, :2 * H] + gh[:, :2 * H])  # one pass over r|z lanes
        r = rz[:, :H]
        z = rz[:, H:2 * H]
        n = jnp.tanh(g_t[:, 2 * H:] + r * gh[:, 2 * H:])
        h = (1.0 - z) * n + z * h
        outs.append(h)

    # 4) Single lane-dense store of every timestep's hidden state.
    out_ref[...] = jnp.concatenate(outs, axis=1)                           # (1, T*H)


# ----------------------------------------------------------------------------
# One-time parameter preparation (transposes hoisted out of the forward path)
# ----------------------------------------------------------------------------
def prepare_params(params):
    """(emb, w_ih, w_hh, b_ih, b_hh) -> (emb, w_ih^T, w_hh^T, b_ih(1,3H), b_hh(1,3H))."""
    emb, w_ih, w_hh, b_ih, b_hh = params
    H = emb.shape[1]
    return (emb,
            jnp.transpose(w_ih),              # (H, 3H)
            jnp.transpose(w_hh),              # (H, 3H)
            b_ih.reshape(1, 3 * H),
            b_hh.reshape(1, 3 * H))


# ----------------------------------------------------------------------------
# pallas_call wrapper (shared by single-step and sequence paths)
# ----------------------------------------------------------------------------
def _run_gru(tokens, h2d, prepared):
    """tokens (T,) int32, h2d (1,H) -> (1, T*H) hidden states for every step."""
    emb, w_ih_t, w_hh_t, b_i, b_h = prepared
    V, H = emb.shape
    T = tokens.shape[0]

    return pl.pallas_call(
        gru_seq_kernel,
        out_shape=jax.ShapeDtypeStruct((1, T * H), jnp.float32),
        grid_spec=pltpu.PrefetchScalarGridSpec(
            num_scalar_prefetch=1,
            grid=(1,),                                     # whole recurrence = one step
            in_specs=[
                pl.BlockSpec((V, H), lambda i, tok: (0, 0)),          # resident table
                pl.BlockSpec((H, 3 * H), lambda i, tok: (0, 0)),      # resident weights
                pl.BlockSpec((H, 3 * H), lambda i, tok: (0, 0)),
                pl.BlockSpec((1, 3 * H), lambda i, tok: (0, 0)),
                pl.BlockSpec((1, 3 * H), lambda i, tok: (0, 0)),
                pl.BlockSpec((1, H), lambda i, tok: (0, 0)),
            ],
            out_specs=pl.BlockSpec((1, T * H), lambda i, tok: (0, 0)),  # lane-dense out
        ),
        compiler_params=pltpu.CompilerParams(
            dimension_semantics=("arbitrary",)),
    )(tokens.astype(jnp.int32), emb, w_ih_t, w_hh_t, b_i, b_h, h2d)


# ----------------------------------------------------------------------------
# Module-level wrappers
# ----------------------------------------------------------------------------
def gru_encoder_forward(token, hidden, prepared):
    """Single step (exact PyTorch module semantics).
    token (1,) int32, hidden (1,1,H) -> (output (1,1,H), hidden (1,1,H))."""
    H = prepared[0].shape[1]
    h2d = hidden.reshape(1, H)
    h_new = _run_gru(token, h2d, prepared)          # (1, H)
    out3 = h_new.reshape(1, 1, H)
    return out3, out3                               # output == new hidden for one step


def gru_encoder_forward_sequence(tokens, hidden, prepared):
    """Whole-sequence encoder: one pallas_call, recurrence fully inside the kernel.
    tokens (T,) int32, hidden (1,1,H) -> (outputs (T,1,1,H), final hidden (1,1,H))."""
    H = prepared[0].shape[1]
    T = tokens.shape[0]
    h2d = hidden.reshape(1, H)
    outs = _run_gru(tokens, h2d, prepared)          # (1, T*H)
    outputs = outs.reshape(T, 1, 1, H)
    hidden_final = outs[:, (T - 1) * H:].reshape(1, 1, H)
    return outputs, hidden_final


# ----------------------------------------------------------------------------
# Params + pure-JAX reference (mirrors torch.nn.GRU math)
# ----------------------------------------------------------------------------
def init_params(key, vocab_size, hidden_size):
    k_emb, k_wih, k_whh, k_bih, k_bhh = jax.random.split(key, 5)
    bound = 1.0 / jnp.sqrt(hidden_size)
    emb = jax.random.normal(k_emb, (vocab_size, hidden_size), jnp.float32)
    w_ih = jax.random.uniform(k_wih, (3 * hidden_size, hidden_size), jnp.float32,
                              -bound, bound)
    w_hh = jax.random.uniform(k_whh, (3 * hidden_size, hidden_size), jnp.float32,
                              -bound, bound)
    b_ih = jax.random.uniform(k_bih, (3 * hidden_size,), jnp.float32, -bound, bound)
    b_hh = jax.random.uniform(k_bhh, (3 * hidden_size,), jnp.float32, -bound, bound)
    return emb, w_ih, w_hh, b_ih, b_hh


def reference_forward(token, hidden, params):
    emb, w_ih, w_hh, b_ih, b_hh = params
    H = emb.shape[1]
    x = emb[token[0]].reshape(1, H)
    h = hidden.reshape(1, H)
    gi = jnp.dot(x, w_ih.T, precision=_HP) + b_ih
    gh = jnp.dot(h, w_hh.T, precision=_HP) + b_hh
    i_r, i_z, i_n = gi[:, :H], gi[:, H:2 * H], gi[:, 2 * H:]
    h_r, h_z, h_n = gh[:, :H], gh[:, H:2 * H], gh[:, 2 * H:]
    r = jax.nn.sigmoid(i_r + h_r)
    z = jax.nn.sigmoid(i_z + h_z)
    n = jnp.tanh(i_n + r * h_n)
    h_new = (1.0 - z) * n + z * h
    return h_new.reshape(1, 1, H), h_new.reshape(1, 1, H)


def reference_sequence(tokens, hidden, params):
    h = hidden
    outs = []
    for t in range(tokens.shape[0]):
        o, h = reference_forward(tokens[t:t + 1], h, params)
        outs.append(o)
    return jnp.stack(outs), h


# ----------------------------------------------------------------------------
if __name__ == "__main__":
    key = jax.random.PRNGKey(0)
    params = init_params(key, VOCAB_SIZE, HIDDEN)
    prepared = prepare_params(params)               # one-time: transposes hoisted

    hidden0 = jnp.zeros((1, 1, HIDDEN), dtype=jnp.float32)   # init_hidden()

    # --- single-step forward (exact module semantics) ---
    token = jnp.array([7], dtype=jnp.int32)
    out, h_new = gru_encoder_forward(token, hidden0, prepared)
    out = jax.block_until_ready(out)
    h_new = jax.block_until_ready(h_new)

    out_ref, h_ref = reference_forward(token, hidden0, params)
    assert out.shape == (1, 1, HIDDEN) and h_new.shape == (1, 1, HIDDEN)
    assert jnp.allclose(out, out_ref, atol=1e-4), "step output mismatch vs reference"
    assert jnp.allclose(h_new, h_ref, atol=1e-4), "step hidden mismatch vs reference"

    # --- whole-sequence forward (recurrence fused into one kernel invocation) ---
    tokens = jax.random.randint(jax.random.PRNGKey(1), (SEQ_LEN,), 0, VOCAB_SIZE,
                                dtype=jnp.int32)
    outs_seq, h_seq = gru_encoder_forward_sequence(tokens, hidden0, prepared)
    outs_seq = jax.block_until_ready(outs_seq)
    h_seq = jax.block_until_ready(h_seq)

    outs_ref, h_seq_ref = reference_sequence(tokens, hidden0, params)
    assert outs_seq.shape == (SEQ_LEN, 1, 1, HIDDEN)
    assert jnp.allclose(outs_seq, outs_ref, atol=1e-4), "sequence outputs mismatch"
    assert jnp.allclose(h_seq, h_seq_ref, atol=1e-4), "sequence final hidden mismatch"

    print("KERNEL_OK")
</pallas_src>

<mosaic_0001>
module attributes {stable_mosaic.version = 11 : i64} {
  func.func @gru_seq_kernel(%arg0: i32, %arg1: memref<1xi32, #tpu.memory_space<smem>>, %arg2: memref<100x32xf32, #tpu.memory_space<vmem>>, %arg3: memref<32x96xf32, #tpu.memory_space<vmem>>, %arg4: memref<32x96xf32, #tpu.memory_space<vmem>>, %arg5: memref<1x96xf32, #tpu.memory_space<vmem>>, %arg6: memref<1x96xf32, #tpu.memory_space<vmem>>, %arg7: memref<1x32xf32, #tpu.memory_space<vmem>>, %arg8: memref<1x32xf32, #tpu.memory_space<vmem>>) attributes {dimension_semantics = [#tpu.dimension_semantics<arbitrary>], iteration_bounds = array<i64: 1>, scalar_prefetch = 1 : i64, scratch_operands = 0 : i64, tpu.core_type = #tpu.core_type<tc>, window_params = [{pipeline_mode = #tpu.pipeline_mode<synchronous>, transform_indices = @transform_0, window_bounds = array<i64: 100, 32>}, {pipeline_mode = #tpu.pipeline_mode<synchronous>, transform_indices = @transform_1, window_bounds = array<i64: 32, 96>}, {pipeline_mode = #tpu.pipeline_mode<synchronous>, transform_indices = @transform_2, window_bounds = array<i64: 32, 96>}, {pipeline_mode = #tpu.pipeline_mode<synchronous>, transform_indices = @transform_3, window_bounds = array<i64: 1, 96>}, {pipeline_mode = #tpu.pipeline_mode<synchronous>, transform_indices = @transform_4, window_bounds = array<i64: 1, 96>}, {pipeline_mode = #tpu.pipeline_mode<synchronous>, transform_indices = @transform_5, window_bounds = array<i64: 1, 32>}, {pipeline_mode = #tpu.pipeline_mode<synchronous>, transform_indices = @transform_6, window_bounds = array<i64: 1, 32>}]} {
    %c0 = arith.constant 0 : index
    %0 = memref.load %arg1[%c0] : memref<1xi32, #tpu.memory_space<smem>>
    %1 = arith.index_cast %0 : i32 to index
    %c0_0 = arith.constant 0 : index
    %2 = vector.load %arg2[%1, %c0_0] : memref<100x32xf32, #tpu.memory_space<vmem>>, vector<1x32xf32>
    %c0_1 = arith.constant 0 : index
    %c0_2 = arith.constant 0 : index
    %3 = vector.load %arg3[%c0_1, %c0_2] : memref<32x96xf32, #tpu.memory_space<vmem>>, vector<32x96xf32>
    %cst = arith.constant dense<0.000000e+00> : vector<1x96xf32>
    %4 = tpu.matmul %2, %3, %cst {dimension_numbers = #tpu.dot_dimension_numbers<[1], [0], [0], [1], [0, 0, 1, 1], [], []>, precision = #tpu.contract_precision<fp32>} : vector<1x32xf32>, vector<32x96xf32>, vector<1x96xf32> -> vector<1x96xf32>
    %c0_3 = arith.constant 0 : index
    %c0_4 = arith.constant 0 : index
    %5 = vector.load %arg5[%c0_3, %c0_4] : memref<1x96xf32, #tpu.memory_space<vmem>>, vector<1x96xf32>
    %6 = arith.addf %4, %5 : vector<1x96xf32>
    %c0_5 = arith.constant 0 : index
    %c0_6 = arith.constant 0 : index
    %7 = vector.load %arg4[%c0_5, %c0_6] : memref<32x96xf32, #tpu.memory_space<vmem>>, vector<32x96xf32>
    %c0_7 = arith.constant 0 : index
    %c0_8 = arith.constant 0 : index
    %8 = vector.load %arg6[%c0_7, %c0_8] : memref<1x96xf32, #tpu.memory_space<vmem>>, vector<1x96xf32>
    %c0_9 = arith.constant 0 : index
    %c0_10 = arith.constant 0 : index
    %9 = vector.load %arg7[%c0_9, %c0_10] : memref<1x32xf32, #tpu.memory_space<vmem>>, vector<1x32xf32>
    %cst_11 = arith.constant dense<0.000000e+00> : vector<1x96xf32>
    %10 = tpu.matmul %9, %7, %cst_11 {dimension_numbers = #tpu.dot_dimension_numbers<[1], [0], [0], [1], [0, 0, 1, 1], [], []>, precision = #tpu.contract_precision<fp32>} : vector<1x32xf32>, vector<32x96xf32>, vector<1x96xf32> -> vector<1x96xf32>
    %11 = arith.addf %10, %8 : vector<1x96xf32>
    %12 = vector.extract_strided_slice %6 {offsets = [0, 0], sizes = [1, 64], strides = [1, 1]} : vector<1x96xf32> to vector<1x64xf32>
    %13 = vector.extract_strided_slice %11 {offsets = [0, 0], sizes = [1, 64], strides = [1, 1]} : vector<1x96xf32> to vector<1x64xf32>
    %14 = arith.addf %12, %13 : vector<1x64xf32>
    %15 = arith.negf %14 : vector<1x64xf32>
    %16 = math.exp %15 : vector<1x64xf32>
    %cst_12 = arith.constant 1.000000e+00 : f32
    %17 = vector.broadcast %cst_12 : f32 to vector<1x64xf32>
    %18 = arith.addf %17, %16 : vector<1x64xf32>
    %19 = arith.divf %17, %18 : vector<1x64xf32>
    %20 = vector.extract_strided_slice %19 {offsets = [0, 0], sizes = [1, 32], strides = [1, 1]} : vector<1x64xf32> to vector<1x32xf32>
    %21 = vector.extract_strided_slice %19 {offsets = [0, 32], sizes = [1, 32], strides = [1, 1]} : vector<1x64xf32> to vector<1x32xf32>
    %22 = vector.extract_strided_slice %6 {offsets = [0, 64], sizes = [1, 32], strides = [1, 1]} : vector<1x96xf32> to vector<1x32xf32>
    %23 = vector.extract_strided_slice %11 {offsets = [0, 64], sizes = [1, 32], strides = [1, 1]} : vector<1x96xf32> to vector<1x32xf32>
    %24 = arith.mulf %20, %23 : vector<1x32xf32>
    %25 = arith.addf %22, %24 : vector<1x32xf32>
    %26 = math.tanh %25 : vector<1x32xf32>
    %cst_13 = arith.constant 1.000000e+00 : f32
    %27 = vector.broadcast %cst_13 : f32 to vector<1x32xf32>
    %28 = arith.subf %27, %21 : vector<1x32xf32>
    %29 = arith.mulf %28, %26 : vector<1x32xf32>
    %30 = arith.mulf %21, %9 : vector<1x32xf32>
    %31 = arith.addf %29, %30 : vector<1x32xf32>
    %c0_14 = arith.constant 0 : index
    %c0_15 = arith.constant 0 : index
    %32 = vector.load %arg8[%c0_14, %c0_15] : memref<1x32xf32, #tpu.memory_space<vmem>>, vector<1x32xf32>
    tpu.vector_store %arg8[%c0_14, %c0_15], %31 {strides = array<i32>} : memref<1x32xf32, #tpu.memory_space<vmem>>, vector<1x32xf32>,
    return
  }
  func.func @transform_0(%arg0: i32, %arg1: memref<1xi32, #tpu.memory_space<smem>>) -> (i32, i32) {
    %c0_i32 = arith.constant 0 : i32
    %c0_i32_0 = arith.constant 0 : i32
    %c0_i32_1 = arith.constant 0 : i32
    return %c0_i32, %c0_i32_0 : i32, i32
  }
  func.func @transform_1(%arg0: i32, %arg1: memref<1xi32, #tpu.memory_space<smem>>) -> (i32, i32) {
    %c0_i32 = arith.constant 0 : i32
    %c0_i32_0 = arith.constant 0 : i32
    %c0_i32_1 = arith.constant 0 : i32
    return %c0_i32, %c0_i32_0 : i32, i32
  }
  func.func @transform_2(%arg0: i32, %arg1: memref<1xi32, #tpu.memory_space<smem>>) -> (i32, i32) {
    %c0_i32 = arith.constant 0 : i32
    %c0_i32_0 = arith.constant 0 : i32
    %c0_i32_1 = arith.constant 0 : i32
    return %c0_i32, %c0_i32_0 : i32, i32
  }
  func.func @transform_3(%arg0: i32, %arg1: memref<1xi32, #tpu.memory_space<smem>>) -> (i32, i32) {
    %c0_i32 = arith.constant 0 : i32
    %c0_i32_0 = arith.constant 0 : i32
    %c0_i32_1 = arith.constant 0 : i32
    return %c0_i32, %c0_i32_0 : i32, i32
  }
  func.func @transform_4(%arg0: i32, %arg1: memref<1xi32, #tpu.memory_space<smem>>) -> (i32, i32) {
    %c0_i32 = arith.constant 0 : i32
    %c0_i32_0 = arith.constant 0 : i32
    %c0_i32_1 = arith.constant 0 : i32
    return %c0_i32, %c0_i32_0 : i32, i32
  }
  func.func @transform_5(%arg0: i32, %arg1: memref<1xi32, #tpu.memory_space<smem>>) -> (i32, i32) {
    %c0_i32 = arith.constant 0 : i32
    %c0_i32_0 = arith.constant 0 : i32
    %c0_i32_1 = arith.constant 0 : i32
    return %c0_i32, %c0_i32_0 : i32, i32
  }
  func.func @transform_6(%arg0: i32, %arg1: memref<1xi32, #tpu.memory_space<smem>>) -> (i32, i32) {
    %c0_i32 = arith.constant 0 : i32
    %c0_i32_0 = arith.constant 0 : i32
    %c0_i32_1 = arith.constant 0 : i32
    return %c0_i32, %c0_i32_0 : i32, i32
  }
}

</mosaic_0001>

<llo_original>
// kernel: tpu_custom_call.1
$region0: #{tpu_custom_call.1}
  #allocation0 [shape = 'u32[]', space=smem, size = 0x4, offset = 0x4, fixed_abs, tag = 'smem constant byte address 0x4 - core index']
  #allocation1 [shape = 'u32[72,128]{1,0:T(1,128)}', space=vmem, size = 0x9000, scoped, tag = 'internal scratch']
  #allocation2 [shape = 's32[1]{0}', space=sflag, size = 0x4, scoped, tag = 'scoped memory for tpu_custom_call.1']
  #allocation3 [shape = 's32[1]{0:T(128)S(6)}', space=smem, size = 0x200, scoped, tag = 'prefetched SMEM operand 0']
  %s0 = inlined_call_operand.<no memory space> [shape: s32[1], index: 0, kind: input, shape index: {}]
  %s1 = inlined_call_operand.vmem [shape: f32[100,32], index: 1, kind: input, shape index: {}]
  %s2 = inlined_call_operand.vmem [shape: f32[32,96], index: 2, kind: input, shape index: {}]
  %s3 = inlined_call_operand.vmem [shape: f32[32,96], index: 3, kind: input, shape index: {}]
  %s4 = inlined_call_operand.vmem [shape: f32[1,96], index: 4, kind: input, shape index: {}]
  %s5 = inlined_call_operand.vmem [shape: f32[1,96], index: 5, kind: input, shape index: {}]
  %s6 = inlined_call_operand.vmem [shape: f32[1,32], index: 6, kind: input, shape index: {}]
  %s7 = inlined_call_operand.hbm [shape: f32[1,32], index: 7, kind: output, shape index: {}]
  %s8 = sld [smem:[#allocation0]]
  $region34: #{tpu_custom_call.1} parent=0
    _
  %s10 = ssub.s32 1, %s8
  %s11 = scalar_select 0, %s10, %s8
  %12 = sst [smem:[#allocation3]] %s0
  $region1: #{tpu_custom_call.1} parent=0
    #allocation4 [shape = 'u8[512]{0}', space=vmem, size = 0x400, scoped, tag = 'output window, operand 0, single buffered']
    #allocation5 [shape = 's32[1]{0}', space=sflag, size = 0x4, scoped, tag = 'scoped memory for tpu_custom_call.1']
    %13 = vsyncpa [#allocation5], 0
    // Predicated region
    $region2: #{tpu_custom_call.1} parent=1 // pred_check
      _
    $region3: #{tpu_custom_call.1} parent=1 // pred_check_branch
      %15 = sbr.rel (0) target = $region5
    $region4: #{tpu_custom_call.1} parent=1 // pred_region
      _
    $region5: #{tpu_custom_call.1} parent=1 // pred_fallthru
      _
    // Predicated region
    $region6: #{tpu_custom_call.1} parent=1 // pred_check
      _
    $region7: #{tpu_custom_call.1} parent=1 // pred_check_branch
      %17 = sbr.rel (0) target = $region9
    $region8: #{tpu_custom_call.1} parent=1 // pred_region
      _
    $region9: #{tpu_custom_call.1} parent=1 // pred_fallthru
      _
    // Predicated region
    $region10: #{tpu_custom_call.1} parent=1 // pred_check
      _
    $region11: #{tpu_custom_call.1} parent=1 // pred_check_branch
      %19 = sbr.rel (0) target = $region13
    $region12: #{tpu_custom_call.1} parent=1 // pred_region
      _
    $region13: #{tpu_custom_call.1} parent=1 // pred_fallthru
      _
    // Predicated region
    $region14: #{tpu_custom_call.1} parent=1 // pred_check
      _
    $region15: #{tpu_custom_call.1} parent=1 // pred_check_branch
      %21 = sbr.rel (0) target = $region17
    $region16: #{tpu_custom_call.1} parent=1 // pred_region
      _
    $region17: #{tpu_custom_call.1} parent=1 // pred_fallthru
      _
    // Predicated region
    $region18: #{tpu_custom_call.1} parent=1 // pred_check
      _
    $region19: #{tpu_custom_call.1} parent=1 // pred_check_branch
      %23 = sbr.rel (0) target = $region21
    $region20: #{tpu_custom_call.1} parent=1 // pred_region
      _
    $region21: #{tpu_custom_call.1} parent=1 // pred_fallthru
      _
    // Predicated region
    $region22: #{tpu_custom_call.1} parent=1 // pred_check
      _
    $region23: #{tpu_custom_call.1} parent=1 // pred_check_branch
      %25 = sbr.rel (0) target = $region25
    $region24: #{tpu_custom_call.1} parent=1 // pred_region
      _
    $region25: #{tpu_custom_call.1} parent=1 // pred_fallthru
      _
    %s26 = sld [smem:[#allocation3]]
    %s27 = scalar_lea.vmem %s1, %s26
    %v28 = vld [vmem:[%s27] sm:$0x1]
    %v29 = vld [vmem:[%s2] sm:$0xff]
    %v30 = vld [vmem:[%s2 + $0x8] sm:$0xff]
    %v31 = vld [vmem:[%s2 + $0x10] sm:$0xff]
    %v32 = vld [vmem:[%s2 + $0x18] sm:$0xff]
    %v33 = vld [vmem:[%s4] sm:$0x1]
    %vm34 = vcmask 261120
    %v36 = vsel %vm34, %v28, 0
    %38 = vmatpush.msra.mxu0 0.0
    %39 = vmatpush.msra.mxu0 0.0
    %40 = vmatpush.msra.mxu0 0.0
    %41 = vmatpush.msra.mxu0 0.0
    %42 = vmatpush.msra.mxu0 0.0
    %43 = vmatpush.msra.mxu0 0.0
    %44 = vmatpush.msra.mxu0 0.0
    %45 = vmatpush.msra.mxu0 0.0
    %46 = vmatpush.msra.mxu0 0.0
    %47 = vmatpush.msra.mxu0 0.0
    %48 = vmatpush.msra.mxu0 0.0
    %49 = vmatpush.msra.mxu0 0.0
    %v50 = vand.u32 %v32, 4294901760
    %51 = vmatpush.msra.mxu0 %v50
    %v52 = vand.u32 %v31, 4294901760
    %53 = vmatpush.msra.mxu0 %v52
    %v54 = vand.u32 %v30, 4294901760
    %55 = vmatpush.msra.mxu0 %v54
    %v56 = vand.u32 %v29, 4294901760
    %57 = vmatpush.msra.mxu0 %v56
    %v58 = vand.u32 %v36, 4294901760
    %v59 = vsub.f32 %v36, %v58
    %v60 = vand.u32 %v59, 4294901760
    %v61 = vsub.f32 %v59, %v60
    %v62 = vand.u32 %v61, 4294901760
    %63 = vmatmul.f32.gmra.mxu0 %v62
    %v64 = vpop.f32.mrf.mxu0
    %v65 = vadd.f32 %v33, %v64
    %66 = vdwg.mxu0
    %67 = vmatpush.msra.mxu0 0.0
    %68 = vmatpush.msra.mxu0 0.0
    %69 = vmatpush.msra.mxu0 0.0
    %70 = vmatpush.msra.mxu0 0.0
    %71 = vmatpush.msra.mxu0 0.0
    %72 = vmatpush.msra.mxu0 0.0
    %73 = vmatpush.msra.mxu0 0.0
    %74 = vmatpush.msra.mxu0 0.0
    %75 = vmatpush.msra.mxu0 0.0
    %76 = vmatpush.msra.mxu0 0.0
    %77 = vmatpush.msra.mxu0 0.0
    %78 = vmatpush.msra.mxu0 0.0
    %v79 = vand.u32 %v32, 4294901760
    %v80 = vsub.f32 %v32, %v79
    %v81 = vand.u32 %v80, 4294901760
    %v82 = vsub.f32 %v80, %v81
    %v83 = vand.u32 %v82, 4294901760
    %84 = vmatpush.msra.mxu0 %v83
    %v85 = vand.u32 %v31, 4294901760
    %v86 = vsub.f32 %v31, %v85
    %v87 = vand.u32 %v86, 4294901760
    %v88 = vsub.f32 %v86, %v87
    %v89 = vand.u32 %v88, 4294901760
    %90 = vmatpush.msra.mxu0 %v89
    %v91 = vand.u32 %v30, 4294901760
    %v92 = vsub.f32 %v30, %v91
    %v93 = vand.u32 %v92, 4294901760
    %v94 = vsub.f32 %v92, %v93
    %v95 = vand.u32 %v94, 4294901760
    %96 = vmatpush.msra.mxu0 %v95
    %v97 = vand.u32 %v29, 4294901760
    %v98 = vsub.f32 %v29, %v97
    %v99 = vand.u32 %v98, 4294901760
    %v100 = vsub.f32 %v98, %v99
    %v101 = vand.u32 %v100, 4294901760
    %102 = vmatpush.msra.mxu0 %v101
    %v103 = vand.u32 %v36, 4294901760
    %104 = vmatmul.f32.gmra.mxu0 %v103
    %v105 = vpop.f32.mrf.mxu0
    %v106 = vadd.f32 %v65, %v105
    %107 = vdwg.mxu0
    %108 = vmatpush.msra.mxu0 0.0
    %109 = vmatpush.msra.mxu0 0.0
    %110 = vmatpush.msra.mxu0 0.0
    %111 = vmatpush.msra.mxu0 0.0
    %112 = vmatpush.msra.mxu0 0.0
    %113 = vmatpush.msra.mxu0 0.0
    %114 = vmatpush.msra.mxu0 0.0
    %115 = vmatpush.msra.mxu0 0.0
    %116 = vmatpush.msra.mxu0 0.0
    %117 = vmatpush.msra.mxu0 0.0
    %118 = vmatpush.msra.mxu0 0.0
    %119 = vmatpush.msra.mxu0 0.0
    %v120 = vand.u32 %v32, 4294901760
    %v121 = vsub.f32 %v32, %v120
    %122 = vmatpush.msra.mxu0 %v121
    %v123 = vand.u32 %v31, 4294901760
    %v124 = vsub.f32 %v31, %v123
    %125 = vmatpush.msra.mxu0 %v124
    %v126 = vand.u32 %v30, 4294901760
    %v127 = vsub.f32 %v30, %v126
    %128 = vmatpush.msra.mxu0 %v127
    %v129 = vand.u32 %v29, 4294901760
    %v130 = vsub.f32 %v29, %v129
    %131 = vmatpush.msra.mxu0 %v130
    %v132 = vand.u32 %v36, 4294901760
    %v133 = vsub.f32 %v36, %v132
    %134 = vmatmul.f32.gmra.mxu0 %v133
    %v135 = vpop.f32.mrf.mxu0
    %v136 = vadd.f32 %v106, %v135
    %137 = vdwg.mxu0
    %138 = vmatpush.msra.mxu0 0.0
    %139 = vmatpush.msra.mxu0 0.0
    %140 = vmatpush.msra.mxu0 0.0
    %141 = vmatpush.msra.mxu0 0.0
    %142 = vmatpush.msra.mxu0 0.0
    %143 = vmatpush.msra.mxu0 0.0
    %144 = vmatpush.msra.mxu0 0.0
    %145 = vmatpush.msra.mxu0 0.0
    %146 = vmatpush.msra.mxu0 0.0
    %147 = vmatpush.msra.mxu0 0.0
    %148 = vmatpush.msra.mxu0 0.0
    %149 = vmatpush.msra.mxu0 0.0
    %v150 = vand.u32 %v32, 4294901760
    %151 = vmatpush.msra.mxu0 %v150
    %v152 = vand.u32 %v31, 4294901760
    %153 = vmatpush.msra.mxu0 %v152
    %v154 = vand.u32 %v30, 4294901760
    %155 = vmatpush.msra.mxu0 %v154
    %v156 = vand.u32 %v29, 4294901760
    %157 = vmatpush.msra.mxu0 %v156
    %v158 = vand.u32 %v36, 4294901760
    %v159 = vsub.f32 %v36, %v158
    %v160 = vand.u32 %v159, 4294901760
    %161 = vmatmul.f32.gmra.mxu0 %v160
    %v162 = vpop.f32.mrf.mxu0
    %v163 = vadd.f32 %v136, %v162
    %164 = vdwg.mxu0
    %165 = vmatpush.msra.mxu0 0.0
    %166 = vmatpush.msra.mxu0 0.0
    %167 = vmatpush.msra.mxu0 0.0
    %168 = vmatpush.msra.mxu0 0.0
    %169 = vmatpush.msra.mxu0 0.0
    %170 = vmatpush.msra.mxu0 0.0
    %171 = vmatpush.msra.mxu0 0.0
    %172 = vmatpush.msra.mxu0 0.0
    %173 = vmatpush.msra.mxu0 0.0
    %174 = vmatpush.msra.mxu0 0.0
    %175 = vmatpush.msra.mxu0 0.0
    %176 = vmatpush.msra.mxu0 0.0
    %v177 = vand.u32 %v32, 4294901760
    %v178 = vsub.f32 %v32, %v177
    %v179 = vand.u32 %v178, 4294901760
    %180 = vmatpush.msra.mxu0 %v179
    %v181 = vand.u32 %v31, 4294901760
    %v182 = vsub.f32 %v31, %v181
    %v183 = vand.u32 %v182, 4294901760
    %184 = vmatpush.msra.mxu0 %v183
    %v185 = vand.u32 %v30, 4294901760
    %v186 = vsub.f32 %v30, %v185
    %v187 = vand.u32 %v186, 4294901760
    %188 = vmatpush.msra.mxu0 %v187
    %v189 = vand.u32 %v29, 4294901760
    %v190 = vsub.f32 %v29, %v189
    %v191 = vand.u32 %v190, 4294901760
    %192 = vmatpush.msra.mxu0 %v191
    %v193 = vand.u32 %v36, 4294901760
    %194 = vmatmul.f32.gmra.mxu0 %v193
    %v195 = vpop.f32.mrf.mxu0
    %v196 = vadd.f32 %v163, %v195
    %197 = vdwg.mxu0
    %198 = vmatpush.msra.mxu0 0.0
    %199 = vmatpush.msra.mxu0 0.0
    %200 = vmatpush.msra.mxu0 0.0
    %201 = vmatpush.msra.mxu0 0.0
    %202 = vmatpush.msra.mxu0 0.0
    %203 = vmatpush.msra.mxu0 0.0
    %204 = vmatpush.msra.mxu0 0.0
    %205 = vmatpush.msra.mxu0 0.0
    %206 = vmatpush.msra.mxu0 0.0
    %207 = vmatpush.msra.mxu0 0.0
    %208 = vmatpush.msra.mxu0 0.0
    %209 = vmatpush.msra.mxu0 0.0
    %v210 = vand.u32 %v32, 4294901760
    %211 = vmatpush.msra.mxu0 %v210
    %v212 = vand.u32 %v31, 4294901760
    %213 = vmatpush.msra.mxu0 %v212
    %v214 = vand.u32 %v30, 4294901760
    %215 = vmatpush.msra.mxu0 %v214
    %v216 = vand.u32 %v29, 4294901760
    %217 = vmatpush.msra.mxu0 %v216
    %v218 = vand.u32 %v36, 4294901760
    %219 = vmatmul.f32.gmra.mxu0 %v218
    %v220 = vpop.f32.mrf.mxu0
    %v221 = vadd.f32 %v196, %v220
    %222 = vdwg.mxu0
    %v223 = vld [vmem:[%s3] sm:$0xff]
    %v224 = vld [vmem:[%s3 + $0x8] sm:$0xff]
    %v225 = vld [vmem:[%s3 + $0x10] sm:$0xff]
    %v226 = vld [vmem:[%s3 + $0x18] sm:$0xff]
    %v227 = vld [vmem:[%s5] sm:$0x1]
    %v228 = vld [vmem:[%s6] sm:$0x1]
    %v230 = vsel %vm34, %v228, 0
    %232 = vmatpush.msra.mxu0 0.0
    %233 = vmatpush.msra.mxu0 0.0
    %234 = vmatpush.msra.mxu0 0.0
    %235 = vmatpush.msra.mxu0 0.0
    %236 = vmatpush.msra.mxu0 0.0
    %237 = vmatpush.msra.mxu0 0.0
    %238 = vmatpush.msra.mxu0 0.0
    %239 = vmatpush.msra.mxu0 0.0
    %240 = vmatpush.msra.mxu0 0.0
    %241 = vmatpush.msra.mxu0 0.0
    %242 = vmatpush.msra.mxu0 0.0
    %243 = vmatpush.msra.mxu0 0.0
    %v244 = vand.u32 %v226, 4294901760
    %245 = vmatpush.msra.mxu0 %v244
    %v246 = vand.u32 %v225, 4294901760
    %247 = vmatpush.msra.mxu0 %v246
    %v248 = vand.u32 %v224, 4294901760
    %249 = vmatpush.msra.mxu0 %v248
    %v250 = vand.u32 %v223, 4294901760
    %251 = vmatpush.msra.mxu0 %v250
    %v252 = vand.u32 %v230, 4294901760
    %v253 = vsub.f32 %v230, %v252
    %v254 = vand.u32 %v253, 4294901760
    %v255 = vsub.f32 %v253, %v254
    %v256 = vand.u32 %v255, 4294901760
    %257 = vmatmul.f32.gmra.mxu0 %v256
    %v258 = vpop.f32.mrf.mxu0
    %v259 = vadd.f32 %v227, %v258
    %260 = vdwg.mxu0
    %261 = vmatpush.msra.mxu0 0.0
    %262 = vmatpush.msra.mxu0 0.0
    %263 = vmatpush.msra.mxu0 0.0
    %264 = vmatpush.msra.mxu0 0.0
    %265 = vmatpush.msra.mxu0 0.0
    %266 = vmatpush.msra.mxu0 0.0
    %267 = vmatpush.msra.mxu0 0.0
    %268 = vmatpush.msra.mxu0 0.0
    %269 = vmatpush.msra.mxu0 0.0
    %270 = vmatpush.msra.mxu0 0.0
    %271 = vmatpush.msra.mxu0 0.0
    %272 = vmatpush.msra.mxu0 0.0
    %v273 = vand.u32 %v226, 4294901760
    %v274 = vsub.f32 %v226, %v273
    %v275 = vand.u32 %v274, 4294901760
    %v276 = vsub.f32 %v274, %v275
    %v277 = vand.u32 %v276, 4294901760
    %278 = vmatpush.msra.mxu0 %v277
    %v279 = vand.u32 %v225, 4294901760
    %v280 = vsub.f32 %v225, %v279
    %v281 = vand.u32 %v280, 4294901760
    %v282 = vsub.f32 %v280, %v281
    %v283 = vand.u32 %v282, 4294901760
    %284 = vmatpush.msra.mxu0 %v283
    %v285 = vand.u32 %v224, 4294901760
    %v286 = vsub.f32 %v224, %v285
    %v287 = vand.u32 %v286, 4294901760
    %v288 = vsub.f32 %v286, %v287
    %v289 = vand.u32 %v288, 4294901760
    %290 = vmatpush.msra.mxu0 %v289
    %v291 = vand.u32 %v223, 4294901760
    %v292 = vsub.f32 %v223, %v291
    %v293 = vand.u32 %v292, 4294901760
    %v294 = vsub.f32 %v292, %v293
    %v295 = vand.u32 %v294, 4294901760
    %296 = vmatpush.msra.mxu0 %v295
    %v297 = vand.u32 %v230, 4294901760
    %298 = vmatmul.f32.gmra.mxu0 %v297
    %v299 = vpop.f32.mrf.mxu0
    %v300 = vadd.f32 %v259, %v299
    %301 = vdwg.mxu0
    %302 = vmatpush.msra.mxu0 0.0
    %303 = vmatpush.msra.mxu0 0.0
    %304 = vmatpush.msra.mxu0 0.0
    %305 = vmatpush.msra.mxu0 0.0
    %306 = vmatpush.msra.mxu0 0.0
    %307 = vmatpush.msra.mxu0 0.0
    %308 = vmatpush.msra.mxu0 0.0
    %309 = vmatpush.msra.mxu0 0.0
    %310 = vmatpush.msra.mxu0 0.0
    %311 = vmatpush.msra.mxu0 0.0
    %312 = vmatpush.msra.mxu0 0.0
    %313 = vmatpush.msra.mxu0 0.0
    %v314 = vand.u32 %v226, 4294901760
    %v315 = vsub.f32 %v226, %v314
    %316 = vmatpush.msra.mxu0 %v315
    %v317 = vand.u32 %v225, 4294901760
    %v318 = vsub.f32 %v225, %v317
    %319 = vmatpush.msra.mxu0 %v318
    %v320 = vand.u32 %v224, 4294901760
    %v321 = vsub.f32 %v224, %v320
    %322 = vmatpush.msra.mxu0 %v321
    %v323 = vand.u32 %v223, 4294901760
    %v324 = vsub.f32 %v223, %v323
    %325 = vmatpush.msra.mxu0 %v324
    %v326 = vand.u32 %v230, 4294901760
    %v327 = vsub.f32 %v230, %v326
    %328 = vmatmul.f32.gmra.mxu0 %v327
    %v329 = vpop.f32.mrf.mxu0
    %v330 = vadd.f32 %v300, %v329
    %331 = vdwg.mxu0
    %332 = vmatpush.msra.mxu0 0.0
    %333 = vmatpush.msra.mxu0 0.0
    %334 = vmatpush.msra.mxu0 0.0
    %335 = vmatpush.msra.mxu0 0.0
    %336 = vmatpush.msra.mxu0 0.0
    %337 = vmatpush.msra.mxu0 0.0
    %338 = vmatpush.msra.mxu0 0.0
    %339 = vmatpush.msra.mxu0 0.0
    %340 = vmatpush.msra.mxu0 0.0
    %341 = vmatpush.msra.mxu0 0.0
    %342 = vmatpush.msra.mxu0 0.0
    %343 = vmatpush.msra.mxu0 0.0
    %v344 = vand.u32 %v226, 4294901760
    %345 = vmatpush.msra.mxu0 %v344
    %v346 = vand.u32 %v225, 4294901760
    %347 = vmatpush.msra.mxu0 %v346
    %v348 = vand.u32 %v224, 4294901760
    %349 = vmatpush.msra.mxu0 %v348
    %v350 = vand.u32 %v223, 4294901760
    %351 = vmatpush.msra.mxu0 %v350
    %v352 = vand.u32 %v230, 4294901760
    %v353 = vsub.f32 %v230, %v352
    %v354 = vand.u32 %v353, 4294901760
    %355 = vmatmul.f32.gmra.mxu0 %v354
    %v356 = vpop.f32.mrf.mxu0
    %v357 = vadd.f32 %v330, %v356
    %358 = vdwg.mxu0
    %359 = vmatpush.msra.mxu0 0.0
    %360 = vmatpush.msra.mxu0 0.0
    %361 = vmatpush.msra.mxu0 0.0
    %362 = vmatpush.msra.mxu0 0.0
    %363 = vmatpush.msra.mxu0 0.0
    %364 = vmatpush.msra.mxu0 0.0
    %365 = vmatpush.msra.mxu0 0.0
    %366 = vmatpush.msra.mxu0 0.0
    %367 = vmatpush.msra.mxu0 0.0
    %368 = vmatpush.msra.mxu0 0.0
    %369 = vmatpush.msra.mxu0 0.0
    %370 = vmatpush.msra.mxu0 0.0
    %v371 = vand.u32 %v226, 4294901760
    %v372 = vsub.f32 %v226, %v371
    %v373 = vand.u32 %v372, 4294901760
    %374 = vmatpush.msra.mxu0 %v373
    %v375 = vand.u32 %v225, 4294901760
    %v376 = vsub.f32 %v225, %v375
    %v377 = vand.u32 %v376, 4294901760
    %378 = vmatpush.msra.mxu0 %v377
    %v379 = vand.u32 %v224, 4294901760
    %v380 = vsub.f32 %v224, %v379
    %v381 = vand.u32 %v380, 4294901760
    %382 = vmatpush.msra.mxu0 %v381
    %v383 = vand.u32 %v223, 4294901760
    %v384 = vsub.f32 %v223, %v383
    %v385 = vand.u32 %v384, 4294901760
    %386 = vmatpush.msra.mxu0 %v385
    %v387 = vand.u32 %v230, 4294901760
    %388 = vmatmul.f32.gmra.mxu0 %v387
    %v389 = vpop.f32.mrf.mxu0
    %v390 = vadd.f32 %v357, %v389
    %391 = vdwg.mxu0
    %392 = vmatpush.msra.mxu0 0.0
    %393 = vmatpush.msra.mxu0 0.0
    %394 = vmatpush.msra.mxu0 0.0
    %395 = vmatpush.msra.mxu0 0.0
    %396 = vmatpush.msra.mxu0 0.0
    %397 = vmatpush.msra.mxu0 0.0
    %398 = vmatpush.msra.mxu0 0.0
    %399 = vmatpush.msra.mxu0 0.0
    %400 = vmatpush.msra.mxu0 0.0
    %401 = vmatpush.msra.mxu0 0.0
    %402 = vmatpush.msra.mxu0 0.0
    %403 = vmatpush.msra.mxu0 0.0
    %v404 = vand.u32 %v226, 4294901760
    %405 = vmatpush.msra.mxu0 %v404
    %v406 = vand.u32 %v225, 4294901760
    %407 = vmatpush.msra.mxu0 %v406
    %v408 = vand.u32 %v224, 4294901760
    %409 = vmatpush.msra.mxu0 %v408
    %v410 = vand.u32 %v223, 4294901760
    %411 = vmatpush.msra.mxu0 %v410
    %v412 = vand.u32 %v230, 4294901760
    %413 = vmatmul.f32.gmra.mxu0 %v412
    %v414 = vpop.f32.mrf.mxu0
    %v415 = vadd.f32 %v390, %v414
    %416 = vdwg.mxu0
    %v417 = vadd.f32 %v221, %v415
    %v418 = vxor.u32 %v417, 2147483648
    %v419 = vmul.f32 %v418, 1.442695
    %v420 = vpow.pop %v419
    %v421 = vadd.f32 %v420, 1.0
    %v422 = vrcp.pop %v421
    %v423 = vmul.f32 %v421, %v422
    %v424 = vsub.f32 1.0, %v423
    %v425 = vmul.f32 %v422, %v424
    %v426 = vadd.f32 %v422, %v425
    %vm427 = vweird.f32 %v421
    %vm428 = vweird.f32 %v422
    %vm429 = vmor %vm427, %vm428
    %v430 = vsel %vm429, %v422, %v426
    %v431 = vand.u32 2147483647, %v421
    %vm432 = vcmp.eq.f32.partialorder %v431, 8.507059e+37
    %v433 = vand.u32 %v421, 2147483648
    %v434 = vor.u32 1.1754944e-38, %v433
    %v435 = vsel %vm432, %v434, %v430
    %v436 = vmul.f32 1.0, %v435
    %438 = vrot.lane.b32.xlu0 %v415, 64
    %v439 = vpop.permute.xlu0 %438
    %v441 = vmul.f32 %v436, %v439
    %443 = vrot.lane.b32.xlu0 %v441, 64
    %v444 = vpop.permute.xlu0 %443
    %v446 = vadd.f32 %v221, %v444
    %v447 = vtanh.pop %v446
    %v448 = vsub.f32 1.0, %v436
    %450 = vrot.lane.b32.xlu0 %v447, 96
    %v451 = vpop.permute.xlu0 %450
    %v453 = vmul.f32 %v448, %v451
    %v454 = vperm.slane %v228, 0
    %455 = vrot.lane.b32.xlu0 %v454, 32
    %v456 = vpop.permute.xlu0 %455
    %v458 = vmul.f32 %v436, %v456
    %v459 = vadd.f32 %v453, %v458
    %461 = vrot.lane.b32.xlu0 %v459, 96
    %v462 = vpop.permute.xlu0 %461
    %vm464 = vcmask 253952
    %465 = vst.msk [vmem:[#allocation4] sm:$0x1] %vm464, %v462
    // Predicated region
    $region26: #{tpu_custom_call.1} parent=1 // pred_check
      _
    $region27: #{tpu_custom_call.1} parent=1 // pred_check_branch
      %467 = sbr.rel (0) target = $region29
    $region28: #{tpu_custom_call.1} parent=1 // pred_region
      %469 = vsyncadd [#allocation5], 0
      %s471 = sshll.u32 [#allocation4], 4
      %s472 = int_to_ptr.vmem [resolvable:$true] %s471
      %s473 = sshll.u32 %s7, 4
      %s474 = int_to_ptr.hbm [resolvable:$true] %s473
      %476 = dma.vmem_to_hbm [thread:$0]  %s472, 16, %s474, [#allocation5]
    $region29: #{tpu_custom_call.1} parent=1 // pred_fallthru
      _
    // Predicated region
    $region30: #{tpu_custom_call.1} parent=1 // pred_check
      _
    $region31: #{tpu_custom_call.1} parent=1 // pred_check_branch
      %478 = sbr.rel (0) target = $region33
    $region32: #{tpu_custom_call.1} parent=1 // pred_region
      %480 = dma.done [#allocation5], 16
    $region33: #{tpu_custom_call.1} parent=1 // pred_fallthru
      _
    %481 = vsyncpa [#allocation5], 1

</llo_original>
